<compile_context>
chip_gen: v7x
topology: tpu7x:2x2x1
jax: 0.10.0
libtpu: 0.0.40
codegen_flags: <defaults>
</compile_context>

<pallas_src>
import jax
import jax.numpy as jnp
from jax import lax
from jax.experimental import pallas as pl
from jax.experimental.pallas import tpu as pltpu

EPS = 1e-5  # nn.InstanceNorm2d default eps


def _upsample_kernel(p_ref, w_ref, o_ref):
    # p_ref: (4*Cin, HW) bf16 phase-shift patches for one image (lane dim = HW)
    # w_ref: (4*Cout, 4*Cin) bf16 phase-combined transposed-conv weights (resident, tiny)
    # o_ref: (4*Cout, HW)   output, phase-major rows, lane dim = HW
    cout4, hw = o_ref.shape
    cout = cout4 // 4

    # ConvTranspose2d hot path: one lane-dense MXU matmul, f32 accumulate.
    y = jnp.dot(w_ref[...], p_ref[...], preferred_element_type=jnp.float32)  # (4*Cout, HW)

    # InstanceNorm2d (affine=False): per output channel over the FULL spatial extent,
    # i.e. over all 4 phase row-blocks and all HW lanes.  Single pass: sum & sum-of-squares.
    rs = jnp.sum(y, axis=1, keepdims=True)        # (4*Cout, 1)  cross-lane reduce (XLU)
    rq = jnp.sum(y * y, axis=1, keepdims=True)    # (4*Cout, 1)
    s_c = rs[0:cout] + rs[cout:2 * cout] + rs[2 * cout:3 * cout] + rs[3 * cout:4 * cout]
    q_c = rq[0:cout] + rq[cout:2 * cout] + rq[2 * cout:3 * cout] + rq[3 * cout:4 * cout]
    inv_n = 1.0 / (4.0 * hw)                      # 4*HW == Hout*Wout elements per channel
    mean_c = s_c * inv_n                          # (Cout, 1)
    var_c = q_c * inv_n - mean_c * mean_c         # biased variance (matches InstanceNorm2d)
    scale_c = lax.rsqrt(var_c + EPS)
    # broadcast per-channel stats back to the 4 phase row-blocks
    mean_f = jnp.concatenate([mean_c, mean_c, mean_c, mean_c], axis=0)     # (4*Cout, 1)
    scale_f = jnp.concatenate([scale_c, scale_c, scale_c, scale_c], axis=0)

    # Normalize + ReLU, lane-dense store.
    o_ref[...] = jnp.maximum((y - mean_f) * scale_f, 0.0).astype(o_ref.dtype)


def upsample_forward(x, wt, bias=None, *, stride=2, padding=1, output_padding=1):
    """x: (N, Cin, H, W) NCHW.  wt: ConvTranspose2d weight (Cin, Cout, k, k).  bias: (Cout,).

    NOTE: `bias` is accepted for interface parity but is mathematically dead here:
    InstanceNorm2d(affine=False) removes any per-channel constant, so it is not fed to the
    kernel (the reference below keeps it and matches exactly).
    """
    N, Cin, H, W = x.shape
    _, Cout, k, _ = wt.shape
    # Phase decomposition below is specialized to the module's config (k=3, s=2, p=1, op=1).
    assert (k, stride, padding, output_padding) == (3, 2, 1, 1)
    Hout, Wout = 2 * H, 2 * W
    HW = H * W

    # --- zero-free 4-tap patches: shifted views of x (one zero row/col of padding only) ---
    xq = jnp.pad(x, ((0, 0), (0, 0), (0, 1), (0, 1)))          # (N, Cin, H+1, W+1)
    shifts = []
    for dy in (0, 1):
        for dx in (0, 1):
            shifts.append(xq[:, :, dy:dy + H, dx:dx + W])      # (N, Cin, H, W)
    p = jnp.stack(shifts, axis=1)                              # (N, 4, Cin, H, W)
    p = p.reshape(N, 4 * Cin, HW).astype(jnp.bfloat16)         # lane dim = HW

    # --- phase-combined weight (4*Cout, 4*Cin) ---
    # Output parity py uses kernel row ky via: (py=0,dy=0)->ky=1, (py=1,dy=0)->ky=2,
    # (py=1,dy=1)->ky=0; (py=0,dy=1) contributes nothing.  Same mapping along W.
    KMAP = {(0, 0): 1, (1, 0): 2, (1, 1): 0}
    phase_rows = []
    for py in (0, 1):
        for px in (0, 1):
            col_blocks = []
            for dy in (0, 1):
                for dx in (0, 1):
                    ky = KMAP.get((py, dy))
                    kx = KMAP.get((px, dx))
                    if ky is None or kx is None:
                        col_blocks.append(jnp.zeros((Cout, Cin), wt.dtype))
                    else:
                        col_blocks.append(wt[:, :, ky, kx].T)  # (Cout, Cin)
            phase_rows.append(jnp.concatenate(col_blocks, axis=1))   # (Cout, 4*Cin)
    w_all = jnp.concatenate(phase_rows, axis=0).astype(jnp.bfloat16)  # (4*Cout, 4*Cin)

    out = pl.pallas_call(
        _upsample_kernel,
        out_shape=jax.ShapeDtypeStruct((N, 4 * Cout, HW), x.dtype),
        grid_spec=pltpu.PrefetchScalarGridSpec(
            num_scalar_prefetch=0,
            grid=(N,),
            in_specs=[
                # leading batch dim squeezed out of the kernel Ref
                pl.BlockSpec((None, 4 * Cin, HW), lambda n: (n, 0, 0)),
                # tiny weight tile, constant index_map -> stays resident across the grid
                pl.BlockSpec((4 * Cout, 4 * Cin), lambda n: (0, 0)),
            ],
            out_specs=pl.BlockSpec((None, 4 * Cout, HW), lambda n: (n, 0, 0)),
        ),
        compiler_params=pltpu.CompilerParams(dimension_semantics=("parallel",)),
    )(p, w_all)

    # Interleave the 4 output phases back into NCHW (single output-sized XLA relayout).
    # TODO(synk): could be fused into the kernel with lane/sublane swizzles if it ever shows
    # up as the bottleneck.
    out = out.reshape(N, 2, 2, Cout, H, W)          # (n, py, px, co, a, b)
    out = out.transpose(0, 3, 4, 1, 5, 2)           # (n, co, a, py, b, px)
    return out.reshape(N, Cout, Hout, Wout)


def _reference(x, wt, bias, stride=2, padding=1, output_padding=1):
    """Pure-JAX reference: ConvTranspose2d (with bias) + InstanceNorm2d + ReLU."""
    Cin, Cout, k, _ = wt.shape
    w_conv = jnp.flip(wt, axis=(2, 3)).transpose(1, 0, 2, 3)       # (Cout, Cin, k, k)
    pb = k - 1 - padding
    pa = k - 1 - padding + output_padding
    y = lax.conv_general_dilated(
        x, w_conv, window_strides=(1, 1),
        padding=((pb, pa), (pb, pa)),
        lhs_dilation=(stride, stride),
        dimension_numbers=('NCHW', 'OIHW', 'NCHW'))
    y = y + bias.reshape(1, Cout, 1, 1)
    mean = jnp.mean(y, axis=(2, 3), keepdims=True)
    var = jnp.mean((y - mean) ** 2, axis=(2, 3), keepdims=True)
    y = (y - mean) * lax.rsqrt(var + EPS)
    return jnp.maximum(y, 0.0)


if __name__ == "__main__":
    N, Cin, Cout, H, W, K = 2, 4, 4, 16, 16, 3

    key = jax.random.PRNGKey(0)
    kx, kw, kb = jax.random.split(key, 3)
    x = jax.random.normal(kx, (N, Cin, H, W), dtype=jnp.float32)
    # deterministic synthetic parameters (ConvTranspose2d weight shape: (Cin, Cout, k, k))
    wt = jax.random.normal(kw, (Cin, Cout, K, K), dtype=jnp.float32) * 0.1
    bias = jax.random.normal(kb, (Cout,), dtype=jnp.float32) * 0.1

    out = upsample_forward(x, wt, bias)
    out = jax.block_until_ready(out)

    # Reference uses the same bf16-rounded operands the kernel feeds the MXU
    # (kernel accumulates in f32), and keeps the bias to demonstrate its exact cancellation.
    x_q = x.astype(jnp.bfloat16).astype(jnp.float32)
    wt_q = wt.astype(jnp.bfloat16).astype(jnp.float32)
    ref = jax.block_until_ready(_reference(x_q, wt_q, bias))

    assert out.shape == (N, Cout, 2 * H, 2 * W), out.shape
    assert jnp.max(jnp.abs(out - ref)) < 1e-3

    print("KERNEL_OK")
</pallas_src>

<mosaic_0001>
module attributes {stable_mosaic.version = 11 : i64} {
  func.func @_upsample_kernel(%arg0: i32, %arg1: memref<1x16x256xbf16, #tpu.memory_space<vmem>>, %arg2: memref<16x16xbf16, #tpu.memory_space<vmem>>, %arg3: memref<1x16x256xf32, #tpu.memory_space<vmem>>) attributes {dimension_semantics = [#tpu.dimension_semantics<parallel>], iteration_bounds = array<i64: 2>, scalar_prefetch = 0 : i64, scratch_operands = 0 : i64, tpu.core_type = #tpu.core_type<tc>, window_params = [{transform_indices = @transform_0, window_bounds = array<i64: 1, 16, 256>}, {pipeline_mode = #tpu.pipeline_mode<synchronous>, transform_indices = @transform_1, window_bounds = array<i64: 16, 16>}, {transform_indices = @transform_2, window_bounds = array<i64: 1, 16, 256>}]} {
    %c0 = arith.constant 0 : index
    %c0_0 = arith.constant 0 : index
    %0 = vector.load %arg2[%c0, %c0_0] : memref<16x16xbf16, #tpu.memory_space<vmem>>, vector<16x16xbf16>
    %c0_1 = arith.constant 0 : index
    %c0_2 = arith.constant 0 : index
    %c0_3 = arith.constant 0 : index
    %1 = vector.load %arg1[%c0_1, %c0_2, %c0_3] : memref<1x16x256xbf16, #tpu.memory_space<vmem>>, vector<1x16x256xbf16>
    %2 = vector.shape_cast %1 : vector<1x16x256xbf16> to vector<16x256xbf16>
    %cst = arith.constant dense<0.000000e+00> : vector<16x256xf32>
    %3 = tpu.matmul %0, %2, %cst {dimension_numbers = #tpu.dot_dimension_numbers<[1], [0], [0], [1], [0, 0, 1, 1], [], []>} : vector<16x16xbf16>, vector<16x256xbf16>, vector<16x256xf32> -> vector<16x256xf32>
    %cst_4 = arith.constant dense<0.000000e+00> : vector<16xf32>
    %4 = vector.multi_reduction <add>, %3, %cst_4 [1] : vector<16x256xf32> to vector<16xf32>
    %5 = vector.shape_cast %4 : vector<16xf32> to vector<16x1xf32>
    %6 = arith.mulf %3, %3 : vector<16x256xf32>
    %cst_5 = arith.constant dense<0.000000e+00> : vector<16xf32>
    %7 = vector.multi_reduction <add>, %6, %cst_5 [1] : vector<16x256xf32> to vector<16xf32>
    %8 = vector.shape_cast %7 : vector<16xf32> to vector<16x1xf32>
    %9 = vector.extract_strided_slice %5 {offsets = [0, 0], sizes = [4, 1], strides = [1, 1]} : vector<16x1xf32> to vector<4x1xf32>
    %10 = vector.extract_strided_slice %5 {offsets = [4, 0], sizes = [4, 1], strides = [1, 1]} : vector<16x1xf32> to vector<4x1xf32>
    %11 = arith.addf %9, %10 : vector<4x1xf32>
    %12 = vector.extract_strided_slice %5 {offsets = [8, 0], sizes = [4, 1], strides = [1, 1]} : vector<16x1xf32> to vector<4x1xf32>
    %13 = arith.addf %11, %12 : vector<4x1xf32>
    %14 = vector.extract_strided_slice %5 {offsets = [12, 0], sizes = [4, 1], strides = [1, 1]} : vector<16x1xf32> to vector<4x1xf32>
    %15 = arith.addf %13, %14 : vector<4x1xf32>
    %16 = vector.extract_strided_slice %8 {offsets = [0, 0], sizes = [4, 1], strides = [1, 1]} : vector<16x1xf32> to vector<4x1xf32>
    %17 = vector.extract_strided_slice %8 {offsets = [4, 0], sizes = [4, 1], strides = [1, 1]} : vector<16x1xf32> to vector<4x1xf32>
    %18 = arith.addf %16, %17 : vector<4x1xf32>
    %19 = vector.extract_strided_slice %8 {offsets = [8, 0], sizes = [4, 1], strides = [1, 1]} : vector<16x1xf32> to vector<4x1xf32>
    %20 = arith.addf %18, %19 : vector<4x1xf32>
    %21 = vector.extract_strided_slice %8 {offsets = [12, 0], sizes = [4, 1], strides = [1, 1]} : vector<16x1xf32> to vector<4x1xf32>
    %22 = arith.addf %20, %21 : vector<4x1xf32>
    %cst_6 = arith.constant 9.765625E-4 : f32
    %23 = vector.broadcast %cst_6 : f32 to vector<4x1xf32>
    %24 = arith.mulf %15, %23 : vector<4x1xf32>
    %cst_7 = arith.constant 9.765625E-4 : f32
    %25 = vector.broadcast %cst_7 : f32 to vector<4x1xf32>
    %26 = arith.mulf %22, %25 : vector<4x1xf32>
    %27 = arith.mulf %24, %24 : vector<4x1xf32>
    %28 = arith.subf %26, %27 : vector<4x1xf32>
    %cst_8 = arith.constant 9.99999974E-6 : f32
    %29 = vector.broadcast %cst_8 : f32 to vector<4x1xf32>
    %30 = arith.addf %28, %29 : vector<4x1xf32>
    %31 = math.rsqrt %30 : vector<4x1xf32>
    %32 = tpu.concatenate %24, %24, %24, %24 in 0 : vector<4x1xf32>, vector<4x1xf32>, vector<4x1xf32>, vector<4x1xf32> -> vector<16x1xf32>
    %33 = tpu.concatenate %31, %31, %31, %31 in 0 : vector<4x1xf32>, vector<4x1xf32>, vector<4x1xf32>, vector<4x1xf32> -> vector<16x1xf32>
    %34 = vector.broadcast %32 : vector<16x1xf32> to vector<16x256xf32>
    %35 = arith.subf %3, %34 : vector<16x256xf32>
    %36 = vector.broadcast %33 : vector<16x1xf32> to vector<16x256xf32>
    %37 = arith.mulf %35, %36 : vector<16x256xf32>
    %cst_9 = arith.constant 0.000000e+00 : f32
    %38 = vector.broadcast %cst_9 : f32 to vector<16x256xf32>
    %39 = arith.maximumf %37, %38 : vector<16x256xf32>
    %c0_10 = arith.constant 0 : index
    %c0_11 = arith.constant 0 : index
    %c0_12 = arith.constant 0 : index
    %40 = vector.load %arg3[%c0_10, %c0_11, %c0_12] : memref<1x16x256xf32, #tpu.memory_space<vmem>>, vector<1x16x256xf32>
    %41 = vector.shape_cast %40 : vector<1x16x256xf32> to vector<16x256xf32>
    %42 = vector.shape_cast %39 : vector<16x256xf32> to vector<1x16x256xf32>
    tpu.vector_store %arg3[%c0_10, %c0_11, %c0_12], %42 {strides = array<i32>} : memref<1x16x256xf32, #tpu.memory_space<vmem>>, vector<1x16x256xf32>,
    return
  }
  func.func @transform_0(%arg0: i32) -> (i32, i32, i32) {
    %c0_i32 = arith.constant 0 : i32
    %c0_i32_0 = arith.constant 0 : i32
    %c0_i32_1 = arith.constant 0 : i32
    return %arg0, %c0_i32, %c0_i32_0 : i32, i32, i32
  }
  func.func @transform_1(%arg0: i32) -> (i32, i32) {
    %c0_i32 = arith.constant 0 : i32
    %c0_i32_0 = arith.constant 0 : i32
    %c0_i32_1 = arith.constant 0 : i32
    return %c0_i32, %c0_i32_0 : i32, i32
  }
  func.func @transform_2(%arg0: i32) -> (i32, i32, i32) {
    %c0_i32 = arith.constant 0 : i32
    %c0_i32_0 = arith.constant 0 : i32
    %c0_i32_1 = arith.constant 0 : i32
    return %arg0, %c0_i32, %c0_i32_0 : i32, i32, i32
  }
}

</mosaic_0001>

<llo_original>
// kernel: tpu_custom_call.1
$region0: #{tpu_custom_call.1}
  #allocation0 [shape = 'u32[]', space=smem, size = 0x4, offset = 0x4, fixed_abs, tag = 'smem constant byte address 0x4 - core index']
  #allocation1 [shape = 'u32[144,128]{1,0:T(1,128)}', space=vmem, size = 0x12000, scoped, tag = 'internal scratch']
  %s0 = inlined_call_operand.hbm [shape: bf16[2,16,256], index: 0, kind: input, shape index: {}]
  %s1 = inlined_call_operand.hbm [shape: bf16[16,16], index: 1, kind: input, shape index: {}]
  %s2 = inlined_call_operand.hbm [shape: f32[2,16,256], index: 2, kind: output, shape index: {}]
  %s3 = sld [smem:[#allocation0]]
  $region49: #{tpu_custom_call.1} parent=0
    _
  %s5 = ssub.s32 1, %s3
  %s6 = scalar_select 0, %s5, %s3
  $region1: #{tpu_custom_call.1} parent=0
    #allocation2 [shape = 'u8[16384]{0}', space=vmem, size = 0x4000, scoped, tag = 'input window, operand 0']
    #allocation3 [shape = 's32[2]{0}', space=sflag, size = 0x8, scoped, tag = 'scoped memory for tpu_custom_call.1']
    #allocation4 [shape = 's32[2]{0}', space=sflag, size = 0x8, scoped, tag = 'scoped memory for tpu_custom_call.1']
    #allocation5 [shape = 'u8[4096]{0}', space=vmem, size = 0x1000, scoped, tag = 'input window, operand 1, single buffered']
    #allocation6 [shape = 's32[1]{0}', space=sflag, size = 0x4, scoped, tag = 'scoped memory for tpu_custom_call.1']
    #allocation7 [shape = 'u8[32768]{0}', space=vmem, size = 0x8000, scoped, tag = 'output window, operand 0']
    %7 = vsyncpa [#allocation3], 0
    %s8 = scalar_lea.sflag [#allocation3], 1
    %9 = vsyncpa %s8, 0
    %10 = vsyncpa [#allocation6], 0
    %11 = vsyncpa [#allocation4], 0
    %s12 = scalar_lea.sflag [#allocation4], 1
    %13 = vsyncpa %s12, 0
    loop: start=0, step=1, limit=4
    $region2: #{tpu_custom_call.1} parent=1 // loop_pre_header
      _
    $region3: #{tpu_custom_call.1} parent=1 // loop_header
      %s15 = sphi 0, %s19
      %p16 = scmp.ge.s32.totalorder %s15, 4
      %s25 = sphi 0, %s27
      %s28 = sphi 0, %s25
      %s29 = sphi 0, %s28
      %s45 = sphi 0, %s29
      %s49 = sphi 0, %s49
      %s51 = sphi 0, %s49
      %s52 = sphi 0, %s51
      %s66 = sphi 0, %s52
      %s72 = sphi 0, %s74
      %s75 = sphi 0, %s72
      %s76 = sphi 0, %s75
      %s92 = sphi 0, %s76
    $region4: #{tpu_custom_call.1} parent=1 // loop_header_branch
      %18 = sbr.rel (%p16) target = $region8
    $region5: #{tpu_custom_call.1} parent=1 // loop_body
      %s20 = ssub.s32 %s15, 1
      %s21 = ssub.s32 %s15, 2
      %s22 = sadd.s32 %s15, 1
      %s23 = ssub.s32 %s15, %s22
      %p24 = scmp.eq.s32.totalorder %s23, 0
      %s26 = sadd.s32 %s25, 1
      %s27 = scalar_select %p24, %s25, %s26
      %p30 = pneg %p24
      %p31 = scmp.eq.s32.totalorder %s15, 1
      %p32 = por %p30, %p31
      %p33 = scmp.ne.s32.totalorder %s25, %s28
      %p34 = scmp.eq.s32.totalorder %s15, 0
      %p35 = por %p33, %p34
      %p36 = scmp.ne.s32.totalorder %s25, %s28
      %p37 = scmp.eq.s32.totalorder %s20, 1
      %p38 = por %p36, %p37
      %p39 = scmp.ne.s32.totalorder %s28, %s29
      %p40 = scmp.eq.s32.totalorder %s20, 0
      %p41 = por %p39, %p40
      %p42 = scmp.ne.s32.totalorder %s28, %s29
      %p43 = scmp.eq.s32.totalorder %s21, 1
      %p44 = por %p42, %p43
      %p46 = scmp.ne.s32.totalorder %s29, %s45
      %p47 = scmp.eq.s32.totalorder %s21, 0
      %p48 = por %p46, %p47
      %s50 = sadd.s32 %s49, 1
      %p53 = scmp.eq.s32.totalorder %s15, 1
      %p54 = scmp.ne.s32.totalorder %s49, %s51
      %p55 = scmp.eq.s32.totalorder %s15, 0
      %p56 = por %p54, %p55
      %p57 = scmp.ne.s32.totalorder %s49, %s51
      %p58 = scmp.eq.s32.totalorder %s20, 1
      %p59 = por %p57, %p58
      %p60 = scmp.ne.s32.totalorder %s51, %s52
      %p61 = scmp.eq.s32.totalorder %s20, 0
      %p62 = por %p60, %p61
      %p63 = scmp.ne.s32.totalorder %s51, %s52
      %p64 = scmp.eq.s32.totalorder %s21, 1
      %p65 = por %p63, %p64
      %p67 = scmp.ne.s32.totalorder %s52, %s66
      %p68 = scmp.eq.s32.totalorder %s21, 0
      %p69 = por %p67, %p68
      %s70 = ssub.s32 %s15, %s22
      %p71 = scmp.eq.s32.totalorder %s70, 0
      %s73 = sadd.s32 %s72, 1
      %s74 = scalar_select %p71, %s72, %s73
      %p77 = pneg %p71
      %p78 = scmp.eq.s32.totalorder %s15, 1
      %p79 = por %p77, %p78
      %p80 = scmp.ne.s32.totalorder %s72, %s75
      %p81 = scmp.eq.s32.totalorder %s15, 0
      %p82 = por %p80, %p81
      %p83 = scmp.ne.s32.totalorder %s72, %s75
      %p84 = scmp.eq.s32.totalorder %s20, 1
      %p85 = por %p83, %p84
      %p86 = scmp.ne.s32.totalorder %s75, %s76
      %p87 = scmp.eq.s32.totalorder %s20, 0
      %p88 = por %p86, %p87
      %p89 = scmp.ne.s32.totalorder %s75, %s76
      %p90 = scmp.eq.s32.totalorder %s21, 1
      %p91 = por %p89, %p90
      %p93 = scmp.ne.s32.totalorder %s76, %s92
      %p94 = scmp.eq.s32.totalorder %s21, 0
      %p95 = por %p93, %p94
      %p96 = scmp.le.s32.totalorder 1, %s15
      %p97 = scmp.lt.s32.totalorder %s15, 3
      %p98 = pnand %p96, %p97
      %p99 = pneg %p98
      // Predicated region
      $region9: #{tpu_custom_call.1} parent=5 // pred_check
        _
      $region10: #{tpu_custom_call.1} parent=5 // pred_check_branch
        %101 = sbr.rel (%p98) target = $region12
      $region11: #{tpu_custom_call.1} parent=5 // pred_region
        %s102 = ssub.s32 %s15, 1
        // Predicated region
        $region13: #{tpu_custom_call.1} parent=11 // pred_check
          %p103 = pneg %p62
        $region14: #{tpu_custom_call.1} parent=11 // pred_check_branch
          %105 = sbr.rel (%p103) target = $region16
        $region15: #{tpu_custom_call.1} parent=11 // pred_region
          %s107 = ssub.s32 128, 128
          %108 = vsyncadd [#allocation6], %s107
          %s109 = sshll.u32 [#allocation5], 4
          %s110 = int_to_ptr.vmem [resolvable:$true] %s109
          %115 = dma.hbm_to_vmem [thread:$0]  %s1, 128, %s110, [#allocation6], 64, 64, 4
        $region16: #{tpu_custom_call.1} parent=11 // pred_fallthru
          _
      $region12: #{tpu_custom_call.1} parent=5 // pred_fallthru
        _
      %p116 = scmp.lt.s32.totalorder %s15, 2
      // Predicated region
      $region17: #{tpu_custom_call.1} parent=5 // pred_check
        %p117 = pneg %p116
      $region18: #{tpu_custom_call.1} parent=5 // pred_check_branch
        %119 = sbr.rel (%p117) target = $region20
      $region19: #{tpu_custom_call.1} parent=5 // pred_region
        // Predicated region
        $region21: #{tpu_custom_call.1} parent=19 // pred_check
          %p120 = pneg %p35
        $region22: #{tpu_custom_call.1} parent=19 // pred_check_branch
          %122 = sbr.rel (%p120) target = $region24
        $region23: #{tpu_custom_call.1} parent=19 // pred_region
          %s123 = sand.u32 %s25, 1
          %s124 = scalar_lea.sflag [#allocation3], %s123
          %s125 = sand.u32 %s25, 1
          %s126 = smul.addr %s125, 16
          %s127 = scalar_lea.vmem [#allocation2], %s126
          %s129 = ssub.s32 256, 256
          %130 = vsyncadd %s124, %s129
          %s131 = smul.addr %s15, 4
          %s132 = smul.addr %s131, 64
          %s133 = scalar_lea.hbm %s0, %s132
          %s134 = sshll.u32 %s127, 4
          %s135 = int_to_ptr.vmem [resolvable:$true] %s134
          %140 = dma.hbm_to_vmem [thread:$0]  %s133, 256, %s135, %s124, 128, 128, 8
        $region24: #{tpu_custom_call.1} parent=19 // pred_fallthru
          _
      $region20: #{tpu_custom_call.1} parent=5 // pred_fallthru
        _
      %p141 = scmp.le.s32.totalorder 1, %s15
      %p142 = scmp.lt.s32.totalorder %s15, 3
      %p143 = pnand %p141, %p142
      %p144 = pneg %p143
      // Predicated region
      $region25: #{tpu_custom_call.1} parent=5 // pred_check
        _
      $region26: #{tpu_custom_call.1} parent=5 // pred_check_branch
        %146 = sbr.rel (%p143) target = $region28
      $region27: #{tpu_custom_call.1} parent=5 // pred_region
        %s147 = ssub.s32 %s15, 1
        %s148 = sand.u32 %s28, 1
        %s149 = scalar_lea.sflag [#allocation3], %s148
        %s150 = sand.u32 %s28, 1
        %s151 = smul.addr %s150, 16
        %s152 = scalar_lea.vmem [#allocation2], %s151
        // Predicated region
        $region29: #{tpu_custom_call.1} parent=27 // pred_check
          %p153 = pneg %p41
        $region30: #{tpu_custom_call.1} parent=27 // pred_check_branch
          %155 = sbr.rel (%p153) target = $region32
        $region31: #{tpu_custom_call.1} parent=27 // pred_region
          %156 = dma.done %s149, 256
        $region32: #{tpu_custom_call.1} parent=27 // pred_fallthru
          _
        // Predicated region
        $region33: #{tpu_custom_call.1} parent=27 // pred_check
          %p157 = pneg %p62
        $region34: #{tpu_custom_call.1} parent=27 // pred_check_branch
          %159 = sbr.rel (%p157) target = $region36
        $region35: #{tpu_custom_call.1} parent=27 // pred_region
          %160 = dma.done [#allocation6], 128
        $region36: #{tpu_custom_call.1} parent=27 // pred_fallthru
          _
        %s161 = sand.u32 %s28, 1
        %s162 = scalar_lea.sflag [#allocation3], %s161
        %s163 = sand.u32 %s28, 1
        %s164 = smul.addr %s163, 16
        %s165 = scalar_lea.vmem [#allocation2], %s164
        %p166 = pneg %p41
        %p167 = pneg %p38
        %p168 = pneg %p62
        %p169 = pneg %p59
        %p170 = pneg %p88
        %p171 = pneg %p85
        %s172 = sand.u32 %s75, 1
        %s173 = scalar_lea.sflag [#allocation4], %s172
        %s174 = sand.u32 %s75, 1
        %s175 = smul.addr %s174, 32
        %s176 = scalar_lea.vmem [#allocation7], %s175
        %v178 = vld [vmem:[#allocation5] sm:$0xf]
        %v179 = vld [vmem:[#allocation5 + $0x4] sm:$0xf]
        %v180 = vld [vmem:[%s152] sm:$0xff]
        %v181 = vld [vmem:[%s152 + $0x8] sm:$0xff]
        %v184 = vunpack.c.l.b16 %v178
        %v185 = vunpack.c.l.b16 %v179
        %v186 = vpack.c.b16 %v185, %v184
        %v189 = vunpack.c.l.b16 %v180
        %v190 = vunpack.c.h.b16 %v180
        %v191 = vunpack.c.l.b16 %v181
        %v192 = vunpack.c.h.b16 %v181
        %v193 = vpack.c.b16 %v191, %v189
        %v194 = vpack.c.b16 %v192, %v190
        %vm197 = vcmask 130048
        %v199 = vsel %vm197, %v186, 0
        %201 = vmatprep.subr.bf16.mxu0 %v194
        %202 = vmatpush1.bf16.msra.mxu0 %v193
        %203 = vmatprep.subr.bf16.mxu0 0
        %204 = vmatpush1.bf16.msra.mxu0 0
        %205 = vmatprep.subr.bf16.mxu0 0
        %206 = vmatpush1.bf16.msra.mxu0 0
        %207 = vmatprep.subr.bf16.mxu0 0
        %208 = vmatpush1.bf16.msra.mxu0 0
        %209 = vmatprep.subr.bf16.mxu0 0
        %210 = vmatpush1.bf16.msra.mxu0 0
        %211 = vmatprep.subr.bf16.mxu0 0
        %212 = vmatpush1.bf16.msra.mxu0 0
        %213 = vmatprep.subr.bf16.mxu0 0
        %214 = vmatpush1.bf16.msra.mxu0 0
        %215 = vmatprep.subr.bf16.mxu0 0
        %216 = vmatpush1.bf16.msra.mxu0 0
        %217 = vmatprep.subr.bf16.mxu0 0
        %218 = vmatpush1.bf16.msra.mxu0 0
        %219 = vmatprep.subr.bf16.mxu0 0
        %220 = vmatpush1.bf16.msra.mxu0 0
        %221 = vmatprep.subr.bf16.mxu0 0
        %222 = vmatpush1.bf16.msra.mxu0 0
        %223 = vmatprep.subr.bf16.mxu0 0
        %224 = vmatpush1.bf16.msra.mxu0 0
        %225 = vmatprep.subr.bf16.mxu0 0
        %226 = vmatpush1.bf16.msra.mxu0 0
        %227 = vmatprep.subr.bf16.mxu0 0
        %228 = vmatpush1.bf16.msra.mxu0 0
        %229 = vmatprep.subr.bf16.mxu0 0
        %230 = vmatpush1.bf16.msra.mxu0 0
        %231 = vmatprep.subr.bf16.mxu0 0
        %232 = vmatpush1.bf16.msra.mxu0 0
        %233 = vmatprep.mubr.bf16.mxu0 0
        %234 = vmatmul.mubr.bf16.gmra.mrb[0].mxu0 %v199
        %v235 = vpop.f32.mrb[0].mxu0
        %v236 = vadd.f32 0.0, %v235
        %v237 = vpop.f32.mrb[0].mxu0
        %v238 = vadd.f32 0.0, %v237
        %v239 = vpop.f32.mrb[0].mxu0
        %v240 = vadd.f32 0.0, %v239
        %v241 = vpop.f32.mrb[0].mxu0
        %v242 = vadd.f32 0.0, %v241
        %243 = vdwg.mxu0
        %v244 = vadd.f32 %v236, %v238
        %245 = vadd.xlane.f32.xlu0 %v244
        %v246 = vpop.xlane.xlu0 %245
        %v247 = vadd.f32 %v240, %v242
        %248 = vadd.xlane.f32.xlu0 %v247
        %v249 = vpop.xlane.xlu0 %248
        %v250 = vmul.f32 %v236, %v236
        %v251 = vmul.f32 %v238, %v238
        %v252 = vmul.f32 %v240, %v240
        %v253 = vmul.f32 %v242, %v242
        %v254 = vadd.f32 %v250, %v251
        %255 = vadd.xlane.f32.xlu0 %v254
        %v256 = vpop.xlane.xlu0 %255
        %v257 = vadd.f32 %v252, %v253
        %258 = vadd.xlane.f32.xlu0 %v257
        %v259 = vpop.xlane.xlu0 %258
        %v261 = vrot.slane %v246, 4
        %v263 = vadd.f32 %v246, %v261
        %v264 = vadd.f32 %v263, %v249
        %v266 = vrot.slane %v249, 4
        %v268 = vadd.f32 %v264, %v266
        %v270 = vrot.slane %v256, 4
        %v272 = vadd.f32 %v256, %v270
        %v273 = vadd.f32 %v272, %v259
        %v275 = vrot.slane %v259, 4
        %v277 = vadd.f32 %v273, %v275
        %v278 = vmul.f32 %v268, 0.0009765625
        %v279 = vmul.f32 %v277, 0.0009765625
        %v280 = vmul.f32 %v278, %v278
        %v281 = vsub.f32 %v279, %v280
        %v282 = vadd.f32 %v281, 1e-05
        %v283 = vrsqrt.pop %v282
        %v285 = vrot.slane %v278, 4
        %vm287 = vcmask 1043456
        %v288 = vsel %vm287, %v278, %v285
        %v290 = vrot.slane %v283, 4
        %v292 = vsel %vm287, %v283, %v290
        %294 = vset.pattern.permute.xlu0 0
        %295 = vperm.xlu0 %294, %v288
        %v296 = vpop.permute.xlu0 %295
        %v298 = vsub.f32 %v236, %v296
        %v299 = vsub.f32 %v238, %v296
        %v300 = vsub.f32 %v240, %v296
        %v301 = vsub.f32 %v242, %v296
        %303 = vset.pattern.permute.xlu0 0
        %304 = vperm.xlu0 %303, %v292
        %v305 = vpop.permute.xlu0 %304
        %v307 = vmul.f32 %v298, %v305
        %v308 = vmul.f32 %v299, %v305
        %v309 = vmul.f32 %v300, %v305
        %v310 = vmul.f32 %v301, %v305
        %v311 = vmax.f32 %v307, 0.0
        %v312 = vmax.f32 %v308, 0.0
        %v313 = vmax.f32 %v309, 0.0
        %v314 = vmax.f32 %v310, 0.0
        %315 = vst [vmem:[%s176] sm:$0xff] %v311
        %316 = vst [vmem:[%s176 + $0x8] sm:$0xff] %v312
        %317 = vst [vmem:[%s176 + $0x10] sm:$0xff] %v313
        %318 = vst [vmem:[%s176 + $0x18] sm:$0xff] %v314
        %s319 = sand.u32 %s75, 1
        %s320 = scalar_lea.sflag [#allocation4], %s319
        %s321 = sand.u32 %s75, 1
        %s322 = smul.addr %s321, 32
        %s323 = scalar_lea.vmem [#allocation7], %s322
        // Predicated region
        $region37: #{tpu_custom_call.1} parent=27 // pred_check
          %p324 = pneg %p85
        $region38: #{tpu_custom_call.1} parent=27 // pred_check_branch
          %326 = sbr.rel (%p324) target = $region40
        $region39: #{tpu_custom_call.1} parent=27 // pred_region
          %s328 = ssub.s32 512, 512
          %329 = vsyncadd %s320, %s328
          %s330 = smul.addr %s20, 4
          %s331 = smul.addr %s330, 128
          %s332 = scalar_lea.hbm %s2, %s331
          %s333 = sshll.u32 %s323, 4
          %s334 = int_to_ptr.vmem [resolvable:$true] %s333
          %339 = dma.vmem_to_hbm [thread:$0]  %s334, 512, %s332, %s320, 256, 256, 16
        $region40: #{tpu_custom_call.1} parent=27 // pred_fallthru
          _
      $region28: #{tpu_custom_call.1} parent=5 // pred_fallthru
        _
      %p340 = scmp.le.s32.totalorder 2, %s15
      // Predicated region
      $region41: #{tpu_custom_call.1} parent=5 // pred_check
        %p341 = pneg %p340
      $region42: #{tpu_custom_call.1} parent=5 // pred_check_branch
        %343 = sbr.rel (%p341) target = $region44
      $region43: #{tpu_custom_call.1} parent=5 // pred_region
        %s344 = ssub.s32 %s15, 2
        // Predicated region
        $region45: #{tpu_custom_call.1} parent=43 // pred_check
          %p345 = pneg %p91
        $region46: #{tpu_custom_call.1} parent=43 // pred_check_branch
          %347 = sbr.rel (%p345) target = $region48
        $region47: #{tpu_custom_call.1} parent=43 // pred_region
          %s348 = sand.u32 %s76, 1
          %s349 = scalar_lea.sflag [#allocation4], %s348
          %s350 = sand.u32 %s76, 1
          %s351 = smul.addr %s350, 32
          %s352 = scalar_lea.vmem [#allocation7], %s351
          %353 = dma.done %s349, 512
        $region48: #{tpu_custom_call.1} parent=43 // pred_fallthru
          _
      $region44: #{tpu_custom_call.1} parent=5 // pred_fallthru
        _
    $region6: #{tpu_custom_call.1} parent=1 // loop_footer
      %s19 = sadd.s32 1, %s15
    $region7: #{tpu_custom_call.1} parent=1 // loop_footer_branch
      %14 = sbr.rel target = $region3
    $region8: #{tpu_custom_call.1} parent=1 // loop_exit
      _
    %354 = vsyncpa [#allocation3], 1
    %s355 = scalar_lea.sflag [#allocation3], 1
    %356 = vsyncpa %s355, 1
    %357 = vsyncpa [#allocation6], 1
    %358 = vsyncpa [#allocation4], 1
    %s359 = scalar_lea.sflag [#allocation4], 1
    %360 = vsyncpa %s359, 1

</llo_original>
